<compile_context>
chip_gen: v7x
topology: tpu7x:2x2x1
jax: 0.10.0
libtpu: 0.0.40
codegen_flags: <defaults>
</compile_context>

<pallas_src>
import functools

import jax
import jax.numpy as jnp
from jax.experimental import pallas as pl
from jax.experimental.pallas import tpu as pltpu


# ----------------------------- configuration -------------------------------
LATENT_DIM = 8
ENSEMBLE_SIZE = 4
STATE_DIM = 8
STATE_EMBED_DIM = 16
ACTION_DIM = 4
ACTION_EMBED_DIM = 8
LAYERS = (32, 32)          # hidden fc layers
OUT_DIM = 1                # pred_type == 'deterministic'
BATCH = 8

LATENT_FLAT = LATENT_DIM * ENSEMBLE_SIZE                                   # 32
SP_ACT_DIM = STATE_DIM + STATE_DIM + ACTION_DIM                            # 20
ENC_OUT = STATE_EMBED_DIM + STATE_EMBED_DIM + ACTION_EMBED_DIM             # 40
FC1_IN = LATENT_FLAT + STATE_EMBED_DIM + ACTION_EMBED_DIM + STATE_EMBED_DIM  # 72
H1, H2 = LAYERS
ACT_IN = LATENT_FLAT + SP_ACT_DIM                                          # 52

# ---- packed-weight slab layout (all row offsets 8-aligned, lane width 40) ---
SLAB_W = ENC_OUT           # 40 lanes
R_ENC = 0                  # (20, 40)  block-diag [ws | ws | wa]
R_W1LAT = 24               # (32, 32)  w1 rows for latent
R_W1ENC = 56               # (40, 32)  w1 rows reordered to [hns | hps | ha]
R_W2 = 96                  # (32, 32)
R_WO = 128                 # (32, 2)   cols [wof | wop]
R_BENC = 160               # (1, 40)   [bs | bs | ba]
R_B1 = 168                 # (1, 32)
R_B2 = 176                 # (1, 32)
R_BO = 184                 # (1, 2)    [bof | bop]
SLAB_ROWS = 192


def _relu(x):
    return jnp.maximum(x, 0.0)


# ------------------------------ Pallas kernel ------------------------------
def _ensemble_reward_decoder_kernel(omit_idx, x_ref, w_ref, out_ref):
    f32 = jnp.float32
    x = x_ref[...]                                     # (B, 52)
    latent = x[:, 0:LATENT_FLAT]                       # (B, 32)
    sp_act = x[:, LATENT_FLAT:LATENT_FLAT + SP_ACT_DIM]  # (B, 20) = [ns | ps | act]

    # Shared state/action encoders as ONE block-diagonal matmul -> [hns|hps|ha].
    h_enc = _relu(
        jnp.dot(sp_act, w_ref[R_ENC:R_ENC + SP_ACT_DIM, 0:ENC_OUT],
                preferred_element_type=f32)
        + w_ref[R_BENC:R_BENC + 1, 0:ENC_OUT])          # (B, 40)

    # fc1 contribution of the encoder features + bias (shared by both branches).
    shared = (jnp.dot(h_enc, w_ref[R_W1ENC:R_W1ENC + ENC_OUT, 0:H1],
                      preferred_element_type=f32)
              + w_ref[R_B1:R_B1 + 1, 0:H1])             # (B, 32)

    # Stack full / ensemble-omitted latents along sublanes -> (2B, 32).
    # Row-major flat index = l * E + e  =>  zero where (col % E) == omit_idx.
    e_idx = jax.lax.broadcasted_iota(jnp.int32, latent.shape, 1) % ENSEMBLE_SIZE
    latent_partial = jnp.where(e_idx == omit_idx, 0.0, latent)
    lat2 = jnp.concatenate([latent, latent_partial], axis=0)      # (2B, 32)
    shared2 = jnp.concatenate([shared, shared], axis=0)           # (2B, 32)

    # fc layer 1 (latent contribution) + fc layer 2, both branches fused.
    h = _relu(jnp.dot(lat2, w_ref[R_W1LAT:R_W1LAT + LATENT_FLAT, 0:H1],
                      preferred_element_type=f32) + shared2)
    h = _relu(jnp.dot(h, w_ref[R_W2:R_W2 + H1, 0:H2],
                      preferred_element_type=f32)
              + w_ref[R_B2:R_B2 + 1, 0:H2])

    # Fused output heads: col 0 = fc_out_full, col 1 = fc_out_partial.
    out_ref[...] = (jnp.dot(h, w_ref[R_WO:R_WO + H2, 0:2 * OUT_DIM],
                            preferred_element_type=f32)
                    + w_ref[R_BO:R_BO + 1, 0:2 * OUT_DIM])        # (2B, 2)


# --------------------------- weight slab packing -----------------------------
def _pack_params(params):
    f32 = jnp.float32
    ws, bs = params["ws"], params["bs"]      # (8,16), (1,16)
    wa, ba = params["wa"], params["ba"]      # (4,8),  (1,8)
    w1, b1 = params["w1"], params["b1"]      # (72,32),(1,32)
    w2, b2 = params["w2"], params["b2"]      # (32,32),(1,32)
    wof, bof = params["wof"], params["bof"]  # (32,1), (1,1)
    wop, bop = params["wop"], params["bop"]  # (32,1), (1,1)

    # Block-diag encoder weight: [ns|ps|act] (20) -> [hns|hps|ha] (40).
    w_enc = jnp.zeros((SP_ACT_DIM, ENC_OUT), f32)
    w_enc = w_enc.at[0:STATE_DIM, 0:STATE_EMBED_DIM].set(ws)
    w_enc = w_enc.at[STATE_DIM:2 * STATE_DIM,
                     STATE_EMBED_DIM:2 * STATE_EMBED_DIM].set(ws)
    w_enc = w_enc.at[2 * STATE_DIM:SP_ACT_DIM,
                     2 * STATE_EMBED_DIM:ENC_OUT].set(wa)
    b_enc = jnp.concatenate([bs, bs, ba], axis=1)                       # (1, 40)

    # w1 rows in reference order: [latent 0:32, hns 32:48, ha 48:56, hps 56:72];
    # reorder encoder rows to match fused h_enc = [hns | hps | ha].
    w1_lat = w1[0:LATENT_FLAT]                                          # (32, 32)
    w1_enc = jnp.concatenate([w1[32:48], w1[56:72], w1[48:56]], axis=0)  # (40, 32)

    wo = jnp.concatenate([wof, wop], axis=1)                            # (32, 2)
    bo = jnp.concatenate([bof, bop], axis=1)                            # (1, 2)

    def padw(a):            # pad lanes to SLAB_W
        return jnp.pad(a, ((0, 0), (0, SLAB_W - a.shape[1])))

    def padr(a, rows):      # pad sublanes to `rows`
        return jnp.pad(a, ((0, rows - a.shape[0]), (0, 0)))

    slab = jnp.concatenate([
        padr(padw(w_enc), 24),      # rows   0: 24
        padw(w1_lat),               # rows  24: 56
        padw(w1_enc),               # rows  56: 96
        padw(w2),                   # rows  96:128
        padw(wo),                   # rows 128:160
        padr(padw(b_enc), 8),       # rows 160:168
        padr(padw(b1), 8),          # rows 168:176
        padr(padw(b2), 8),          # rows 176:184
        padr(padw(bo), 8),          # rows 184:192
    ], axis=0)
    assert slab.shape == (SLAB_ROWS, SLAB_W)
    return slab


# ------------------------------- wrapper ------------------------------------
def ensemble_reward_decoder(params, latent_state, next_state, prev_state,
                            actions, omit_idx):
    """Returns (out_full, out_partial), each (B, OUT_DIM)."""
    # TODO(synk): utl.squash_action depends on runtime `args`; treated as identity here.
    B = latent_state.shape[0]
    omit = -1 if omit_idx is None else int(omit_idx)

    x = jnp.concatenate([latent_state, next_state, prev_state, actions],
                        axis=-1)                       # (B, 52) -> one DMA
    slab = _pack_params(params)                        # (192, 40) -> one DMA

    vmem = pl.BlockSpec(memory_space=pltpu.MemorySpace.VMEM)
    kernel = functools.partial(_ensemble_reward_decoder_kernel, omit)
    out = pl.pallas_call(
        kernel,
        out_shape=jax.ShapeDtypeStruct((2 * B, 2 * OUT_DIM), jnp.float32),
        in_specs=[vmem, vmem],
        out_specs=vmem,
    )(x, slab)

    out_full = out[:B, 0:OUT_DIM]
    out_partial = out[B:, OUT_DIM:2 * OUT_DIM]
    return out_full, out_partial


# ------------------------ deterministic param init --------------------------
def init_params(key):
    def linear(k, fan_in, fan_out):
        kw, kb = jax.random.split(k)
        bound = 1.0 / float(fan_in) ** 0.5
        w = jax.random.uniform(kw, (fan_in, fan_out), jnp.float32, -bound, bound)
        b = jax.random.uniform(kb, (1, fan_out), jnp.float32, -bound, bound)
        return w, b

    keys = jax.random.split(key, 6)
    ws, bs = linear(keys[0], STATE_DIM, STATE_EMBED_DIM)          # state_encoder
    wa, ba = linear(keys[1], ACTION_DIM, ACTION_EMBED_DIM)        # action_encoder
    w1, b1 = linear(keys[2], FC1_IN, LAYERS[0])                   # fc_layers[0]
    w2, b2 = linear(keys[3], LAYERS[0], LAYERS[1])                # fc_layers[1]
    wof, bof = linear(keys[4], LAYERS[1], OUT_DIM)                # fc_out_full
    wop, bop = linear(keys[5], LAYERS[1], OUT_DIM)                # fc_out_partial
    return dict(ws=ws, bs=bs, wa=wa, ba=ba, w1=w1, b1=b1, w2=w2, b2=b2,
                wof=wof, bof=bof, wop=wop, bop=bop)


# ------------------------------ JAX reference --------------------------------
def reference(params, latent_state, next_state, prev_state, actions, omit_idx):
    lat = latent_state
    lat3 = lat.reshape(lat.shape[0], LATENT_DIM, ENSEMBLE_SIZE)
    lat_p = lat3.at[:, :, omit_idx].set(0.0).reshape(lat.shape[0], -1)

    hns = _relu(next_state @ params["ws"] + params["bs"])
    ha = _relu(actions @ params["wa"] + params["ba"])
    hps = _relu(prev_state @ params["ws"] + params["bs"])

    def mlp(latf):
        h = jnp.concatenate([latf, hns, ha, hps], axis=-1)
        h = _relu(h @ params["w1"] + params["b1"])
        h = _relu(h @ params["w2"] + params["b2"])
        return h

    out_full = mlp(lat) @ params["wof"] + params["bof"]
    out_partial = mlp(lat_p) @ params["wop"] + params["bop"]
    return out_full, out_partial


# ---------------------------------- main ------------------------------------
if __name__ == "__main__":
    key = jax.random.PRNGKey(0)
    k_par, k_lat, k_ns, k_ps, k_ac = jax.random.split(key, 5)

    params = init_params(k_par)
    latent_state = jax.random.normal(k_lat, (BATCH, LATENT_FLAT), jnp.float32)
    next_state = jax.random.normal(k_ns, (BATCH, STATE_DIM), jnp.float32)
    prev_state = jax.random.normal(k_ps, (BATCH, STATE_DIM), jnp.float32)
    actions = jax.random.normal(k_ac, (BATCH, ACTION_DIM), jnp.float32)
    omit_idx = 1

    out_full, out_partial = ensemble_reward_decoder(
        params, latent_state, next_state, prev_state, actions, omit_idx)
    jax.block_until_ready((out_full, out_partial))

    ref_full, ref_partial = reference(
        params, latent_state, next_state, prev_state, actions, omit_idx)

    assert out_full.shape == (BATCH, OUT_DIM) and out_partial.shape == (BATCH, OUT_DIM)
    assert jnp.allclose(out_full, ref_full, atol=1e-5, rtol=1e-5)
    assert jnp.allclose(out_partial, ref_partial, atol=1e-5, rtol=1e-5)
    print("KERNEL_OK")
</pallas_src>

<mosaic_0001>
module attributes {stable_mosaic.version = 11 : i64} {
  func.func @_ensemble_reward_decoder_kernel(%arg0: memref<8x52xf32, #tpu.memory_space<vmem>>, %arg1: memref<192x40xf32, #tpu.memory_space<vmem>>, %arg2: memref<16x2xf32, #tpu.memory_space<vmem>>) attributes {dimension_semantics = [], scalar_prefetch = 0 : i64, scratch_operands = 0 : i64, tpu.core_type = #tpu.core_type<tc>} {
    %c0 = arith.constant 0 : index
    %c0_0 = arith.constant 0 : index
    %0 = vector.load %arg0[%c0, %c0_0] : memref<8x52xf32, #tpu.memory_space<vmem>>, vector<8x52xf32>
    %1 = vector.extract_strided_slice %0 {offsets = [0, 0], sizes = [8, 32], strides = [1, 1]} : vector<8x52xf32> to vector<8x32xf32>
    %2 = vector.extract_strided_slice %0 {offsets = [0, 32], sizes = [8, 20], strides = [1, 1]} : vector<8x52xf32> to vector<8x20xf32>
    %c0_1 = arith.constant 0 : index
    %c0_2 = arith.constant 0 : index
    %3 = vector.load %arg1[%c0_1, %c0_2] : memref<192x40xf32, #tpu.memory_space<vmem>>, vector<20x40xf32>
    %cst = arith.constant dense<0.000000e+00> : vector<8x40xf32>
    %4 = tpu.matmul %2, %3, %cst {dimension_numbers = #tpu.dot_dimension_numbers<[1], [0], [0], [1], [0, 0, 1, 1], [], []>} : vector<8x20xf32>, vector<20x40xf32>, vector<8x40xf32> -> vector<8x40xf32>
    %c160 = arith.constant 160 : index
    %c0_3 = arith.constant 0 : index
    %5 = vector.load %arg1[%c160, %c0_3] : memref<192x40xf32, #tpu.memory_space<vmem>>, vector<1x40xf32>
    %6 = vector.broadcast %5 : vector<1x40xf32> to vector<8x40xf32>
    %7 = arith.addf %4, %6 : vector<8x40xf32>
    %cst_4 = arith.constant 0.000000e+00 : f32
    %8 = vector.broadcast %cst_4 : f32 to vector<8x40xf32>
    %9 = arith.maximumf %7, %8 : vector<8x40xf32>
    %c56 = arith.constant 56 : index
    %c0_5 = arith.constant 0 : index
    %10 = vector.load %arg1[%c56, %c0_5] : memref<192x40xf32, #tpu.memory_space<vmem>>, vector<40x32xf32>
    %cst_6 = arith.constant dense<0.000000e+00> : vector<8x32xf32>
    %11 = tpu.matmul %9, %10, %cst_6 {dimension_numbers = #tpu.dot_dimension_numbers<[1], [0], [0], [1], [0, 0, 1, 1], [], []>} : vector<8x40xf32>, vector<40x32xf32>, vector<8x32xf32> -> vector<8x32xf32>
    %c168 = arith.constant 168 : index
    %c0_7 = arith.constant 0 : index
    %12 = vector.load %arg1[%c168, %c0_7] : memref<192x40xf32, #tpu.memory_space<vmem>>, vector<1x32xf32>
    %13 = vector.broadcast %12 : vector<1x32xf32> to vector<8x32xf32>
    %14 = arith.addf %11, %13 : vector<8x32xf32>
    %15 = tpu.iota {dimensions = array<i32: 1>} : vector<8x32xi32>
    %c4_i32 = arith.constant 4 : i32
    %c0_i32 = arith.constant 0 : i32
    %16 = arith.cmpi eq, %c4_i32, %c0_i32 : i32
    %c1_i32 = arith.constant 1 : i32
    %17 = arith.select %16, %c1_i32, %c4_i32 : i32
    %18 = vector.broadcast %17 : i32 to vector<8x32xi32>
    %19 = arith.remsi %15, %18 : vector<8x32xi32>
    %c0_i32_8 = arith.constant 0 : i32
    %20 = vector.broadcast %c0_i32_8 : i32 to vector<8x32xi32>
    %21 = arith.cmpi ne, %19, %20 : vector<8x32xi32>
    %c0_i32_9 = arith.constant 0 : i32
    %22 = vector.broadcast %c0_i32_9 : i32 to vector<8x32xi32>
    %23 = arith.cmpi slt, %19, %22 : vector<8x32xi32>
    %c0_i32_10 = arith.constant 0 : i32
    %24 = arith.cmpi slt, %17, %c0_i32_10 : i32
    %25 = vector.broadcast %24 : i1 to vector<8x32xi1>
    %26 = vector.broadcast %25 : vector<8x32xi1> to vector<8x32xi1>
    %27 = arith.xori %23, %26 : vector<8x32xi1>
    %28 = arith.andi %27, %21 : vector<8x32xi1>
    %29 = vector.broadcast %17 : i32 to vector<8x32xi32>
    %30 = arith.addi %19, %29 : vector<8x32xi32>
    %31 = arith.select %28, %30, %19 : vector<8x32xi1>, vector<8x32xi32>
    %c1_i32_11 = arith.constant 1 : i32
    %32 = vector.broadcast %c1_i32_11 : i32 to vector<8x32xi32>
    %33 = arith.cmpi eq, %31, %32 : vector<8x32xi32>
    %cst_12 = arith.constant 0.000000e+00 : f32
    %34 = vector.broadcast %cst_12 : f32 to vector<8x32xf32>
    %35 = arith.select %33, %34, %1 : vector<8x32xi1>, vector<8x32xf32>
    %36 = tpu.concatenate %1, %35 in 0 : vector<8x32xf32>, vector<8x32xf32> -> vector<16x32xf32>
    %37 = tpu.concatenate %14, %14 in 0 : vector<8x32xf32>, vector<8x32xf32> -> vector<16x32xf32>
    %c24 = arith.constant 24 : index
    %c0_13 = arith.constant 0 : index
    %38 = vector.load %arg1[%c24, %c0_13] : memref<192x40xf32, #tpu.memory_space<vmem>>, vector<32x32xf32>
    %cst_14 = arith.constant dense<0.000000e+00> : vector<16x32xf32>
    %39 = tpu.matmul %36, %38, %cst_14 {dimension_numbers = #tpu.dot_dimension_numbers<[1], [0], [0], [1], [0, 0, 1, 1], [], []>} : vector<16x32xf32>, vector<32x32xf32>, vector<16x32xf32> -> vector<16x32xf32>
    %40 = arith.addf %39, %37 : vector<16x32xf32>
    %cst_15 = arith.constant 0.000000e+00 : f32
    %41 = vector.broadcast %cst_15 : f32 to vector<16x32xf32>
    %42 = arith.maximumf %40, %41 : vector<16x32xf32>
    %c96 = arith.constant 96 : index
    %c0_16 = arith.constant 0 : index
    %43 = vector.load %arg1[%c96, %c0_16] : memref<192x40xf32, #tpu.memory_space<vmem>>, vector<32x32xf32>
    %cst_17 = arith.constant dense<0.000000e+00> : vector<16x32xf32>
    %44 = tpu.matmul %42, %43, %cst_17 {dimension_numbers = #tpu.dot_dimension_numbers<[1], [0], [0], [1], [0, 0, 1, 1], [], []>} : vector<16x32xf32>, vector<32x32xf32>, vector<16x32xf32> -> vector<16x32xf32>
    %c176 = arith.constant 176 : index
    %c0_18 = arith.constant 0 : index
    %45 = vector.load %arg1[%c176, %c0_18] : memref<192x40xf32, #tpu.memory_space<vmem>>, vector<1x32xf32>
    %46 = vector.broadcast %45 : vector<1x32xf32> to vector<16x32xf32>
    %47 = arith.addf %44, %46 : vector<16x32xf32>
    %cst_19 = arith.constant 0.000000e+00 : f32
    %48 = vector.broadcast %cst_19 : f32 to vector<16x32xf32>
    %49 = arith.maximumf %47, %48 : vector<16x32xf32>
    %c128 = arith.constant 128 : index
    %c0_20 = arith.constant 0 : index
    %50 = vector.load %arg1[%c128, %c0_20] : memref<192x40xf32, #tpu.memory_space<vmem>>, vector<32x2xf32>
    %cst_21 = arith.constant dense<0.000000e+00> : vector<16x2xf32>
    %51 = tpu.matmul %49, %50, %cst_21 {dimension_numbers = #tpu.dot_dimension_numbers<[1], [0], [0], [1], [0, 0, 1, 1], [], []>} : vector<16x32xf32>, vector<32x2xf32>, vector<16x2xf32> -> vector<16x2xf32>
    %c184 = arith.constant 184 : index
    %c0_22 = arith.constant 0 : index
    %52 = vector.load %arg1[%c184, %c0_22] : memref<192x40xf32, #tpu.memory_space<vmem>>, vector<1x2xf32>
    %53 = vector.broadcast %52 : vector<1x2xf32> to vector<16x2xf32>
    %54 = arith.addf %51, %53 : vector<16x2xf32>
    %c0_23 = arith.constant 0 : index
    %c0_24 = arith.constant 0 : index
    %55 = vector.load %arg2[%c0_23, %c0_24] : memref<16x2xf32, #tpu.memory_space<vmem>>, vector<16x2xf32>
    tpu.vector_store %arg2[%c0_23, %c0_24], %54 {strides = array<i32>} : memref<16x2xf32, #tpu.memory_space<vmem>>, vector<16x2xf32>,
    return
  }
}

</mosaic_0001>

<llo_original>
// kernel: tpu_custom_call.1
$region0: #{tpu_custom_call.1}
  #allocation0 [shape = 'u32[]', space=smem, size = 0x4, offset = 0x4, fixed_abs, tag = 'smem constant byte address 0x4 - core index']
  #allocation1 [shape = 'u32[144,128]{1,0:T(1,128)}', space=vmem, size = 0x12000, scoped, tag = 'internal scratch']
  %s0 = inlined_call_operand.vmem [shape: f32[8,52], index: 0, kind: input, shape index: {}]
  %s1 = inlined_call_operand.vmem [shape: f32[192,40], index: 1, kind: input, shape index: {}]
  %s2 = inlined_call_operand.vmem [shape: f32[16,2], index: 2, kind: output, shape index: {}]
  %s3 = sld [smem:[#allocation0]]
  $region18: #{tpu_custom_call.1} parent=0
    _
  %s5 = ssub.s32 1, %s3
  %s6 = scalar_select 0, %s5, %s3
  // Predicated region
  $region2: #{tpu_custom_call.1} parent=0 // pred_check
    _
  $region3: #{tpu_custom_call.1} parent=0 // pred_check_branch
    %8 = sbr.rel (0) target = $region5
  $region4: #{tpu_custom_call.1} parent=0 // pred_region
    _
  $region5: #{tpu_custom_call.1} parent=0 // pred_fallthru
    _
  // Predicated region
  $region6: #{tpu_custom_call.1} parent=0 // pred_check
    _
  $region7: #{tpu_custom_call.1} parent=0 // pred_check_branch
    %10 = sbr.rel (0) target = $region9
  $region8: #{tpu_custom_call.1} parent=0 // pred_region
    _
  $region9: #{tpu_custom_call.1} parent=0 // pred_fallthru
    _
  %v11 = vld [vmem:[%s0] sm:$0xff]
  %v12 = vld [vmem:[%s1] sm:$0xff]
  %v13 = vld [vmem:[%s1 + $0x8] sm:$0xff]
  %v14 = vld [vmem:[%s1 + $0x10] sm:$0xf]
  %v15 = vld [vmem:[%s1 + $0xa0] sm:$0x1]
  %v16 = vlaneseq
  %v17 = vshrl.u32 %v16, 7
  %v18 = vsub.s32 0, %v17
  %v19 = vrot.slane %v15, %v18
  %21 = vrot.lane.b32.xlu0 %v11, 96
  %v22 = vpop.permute.xlu0 %21
  %vm23 = vcmask 162816
  %v24 = vsel %vm23, %v22, 0
  %vm26 = vcmask 1043456
  %v28 = vsel %vm26, %v14, 0
  %30 = vmatprep.subr.mxu0 0.0
  %31 = vmatpush1.msra.mxu0 %v12
  %32 = vmatprep.subr.mxu0 0.0
  %33 = vmatpush1.msra.mxu0 %v13
  %34 = vmatprep.subr.mxu0 0.0
  %35 = vmatpush1.msra.mxu0 %v28
  %36 = vmatprep.subr.mxu0 0.0
  %37 = vmatpush1.msra.mxu0 0.0
  %38 = vmatprep.subr.mxu0 0.0
  %39 = vmatpush1.msra.mxu0 0.0
  %40 = vmatprep.subr.mxu0 0.0
  %41 = vmatpush1.msra.mxu0 0.0
  %42 = vmatprep.subr.mxu0 0.0
  %43 = vmatpush1.msra.mxu0 0.0
  %44 = vmatprep.subr.mxu0 0.0
  %45 = vmatpush1.msra.mxu0 0.0
  %46 = vmatprep.subr.mxu0 0.0
  %47 = vmatpush1.msra.mxu0 0.0
  %48 = vmatprep.subr.mxu0 0.0
  %49 = vmatpush1.msra.mxu0 0.0
  %50 = vmatprep.subr.mxu0 0.0
  %51 = vmatpush1.msra.mxu0 0.0
  %52 = vmatprep.subr.mxu0 0.0
  %53 = vmatpush1.msra.mxu0 0.0
  %54 = vmatprep.subr.mxu0 0.0
  %55 = vmatpush1.msra.mxu0 0.0
  %56 = vmatprep.subr.mxu0 0.0
  %57 = vmatpush1.msra.mxu0 0.0
  %58 = vmatprep.subr.mxu0 0.0
  %59 = vmatpush1.msra.mxu0 0.0
  %60 = vmatprep.subr.mxu0 0.0
  %61 = vmatpush1.msra.mxu0 0.0
  %62 = vmatprep.subr.mxu0 0.0
  %63 = vmatpush1.msra.mxu0 0.0
  %64 = vmatprep.subr.mxu0 0.0
  %65 = vmatpush1.msra.mxu0 0.0
  %66 = vmatprep.subr.mxu0 0.0
  %67 = vmatpush1.msra.mxu0 0.0
  %68 = vmatprep.subr.mxu0 0.0
  %69 = vmatpush1.msra.mxu0 0.0
  %70 = vmatprep.subr.mxu0 0.0
  %71 = vmatpush1.msra.mxu0 0.0
  %72 = vmatprep.subr.mxu0 0.0
  %73 = vmatpush1.msra.mxu0 0.0
  %74 = vmatprep.subr.mxu0 0.0
  %75 = vmatpush1.msra.mxu0 0.0
  %76 = vmatprep.subr.mxu0 0.0
  %77 = vmatpush1.msra.mxu0 0.0
  %78 = vmatprep.subr.mxu0 0.0
  %79 = vmatpush1.msra.mxu0 0.0
  %80 = vmatprep.subr.mxu0 0.0
  %81 = vmatpush1.msra.mxu0 0.0
  %82 = vmatprep.subr.mxu0 0.0
  %83 = vmatpush1.msra.mxu0 0.0
  %84 = vmatprep.subr.mxu0 0.0
  %85 = vmatpush1.msra.mxu0 0.0
  %86 = vmatprep.subr.mxu0 0.0
  %87 = vmatpush1.msra.mxu0 0.0
  %88 = vmatprep.subr.mxu0 0.0
  %89 = vmatpush1.msra.mxu0 0.0
  %90 = vmatprep.subr.mxu0 0.0
  %91 = vmatpush1.msra.mxu0 0.0
  %92 = vmatprep.subr.mxu0 0.0
  %93 = vmatpush1.msra.mxu0 0.0
  %94 = vmatprep.mubr.f32.mxu0 0.0
  %95 = vmatmul.mubr.f32.gmra.mrb[0].mxu0 %v24
  %v96 = vpop.f32.mrb[0].mxu0
  %v97 = vadd.f32 %v19, %v96
  %v98 = vpop.f32.mrb[0].mxu0
  %99 = vdwg.mxu0
  %v100 = vmax.f32 %v97, 0.0
  %v101 = vld [vmem:[%s1 + $0x38] sm:$0xff]
  %v102 = vld [vmem:[%s1 + $0x40] sm:$0xff]
  %v103 = vld [vmem:[%s1 + $0x48] sm:$0xff]
  %v104 = vld [vmem:[%s1 + $0x50] sm:$0xff]
  %v105 = vld [vmem:[%s1 + $0x58] sm:$0xff]
  %v106 = vld [vmem:[%s1 + $0xa8] sm:$0x1]
  %v107 = vlaneseq
  %v108 = vshrl.u32 %v107, 7
  %v109 = vsub.s32 0, %v108
  %v110 = vrot.slane %v106, %v109
  %vm111 = vcmask 326656
  %v113 = vsel %vm111, %v100, 0
  %115 = vmatprep.subr.mxu0 0.0
  %116 = vmatpush1.msra.mxu0 %v101
  %117 = vmatprep.subr.mxu0 0.0
  %118 = vmatpush1.msra.mxu0 %v102
  %119 = vmatprep.subr.mxu0 0.0
  %120 = vmatpush1.msra.mxu0 %v103
  %121 = vmatprep.subr.mxu0 0.0
  %122 = vmatpush1.msra.mxu0 %v104
  %123 = vmatprep.subr.mxu0 0.0
  %124 = vmatpush1.msra.mxu0 %v105
  %125 = vmatprep.subr.mxu0 0.0
  %126 = vmatpush1.msra.mxu0 0.0
  %127 = vmatprep.subr.mxu0 0.0
  %128 = vmatpush1.msra.mxu0 0.0
  %129 = vmatprep.subr.mxu0 0.0
  %130 = vmatpush1.msra.mxu0 0.0
  %131 = vmatprep.subr.mxu0 0.0
  %132 = vmatpush1.msra.mxu0 0.0
  %133 = vmatprep.subr.mxu0 0.0
  %134 = vmatpush1.msra.mxu0 0.0
  %135 = vmatprep.subr.mxu0 0.0
  %136 = vmatpush1.msra.mxu0 0.0
  %137 = vmatprep.subr.mxu0 0.0
  %138 = vmatpush1.msra.mxu0 0.0
  %139 = vmatprep.subr.mxu0 0.0
  %140 = vmatpush1.msra.mxu0 0.0
  %141 = vmatprep.subr.mxu0 0.0
  %142 = vmatpush1.msra.mxu0 0.0
  %143 = vmatprep.subr.mxu0 0.0
  %144 = vmatpush1.msra.mxu0 0.0
  %145 = vmatprep.subr.mxu0 0.0
  %146 = vmatpush1.msra.mxu0 0.0
  %147 = vmatprep.subr.mxu0 0.0
  %148 = vmatpush1.msra.mxu0 0.0
  %149 = vmatprep.subr.mxu0 0.0
  %150 = vmatpush1.msra.mxu0 0.0
  %151 = vmatprep.subr.mxu0 0.0
  %152 = vmatpush1.msra.mxu0 0.0
  %153 = vmatprep.subr.mxu0 0.0
  %154 = vmatpush1.msra.mxu0 0.0
  %155 = vmatprep.subr.mxu0 0.0
  %156 = vmatpush1.msra.mxu0 0.0
  %157 = vmatprep.subr.mxu0 0.0
  %158 = vmatpush1.msra.mxu0 0.0
  %159 = vmatprep.subr.mxu0 0.0
  %160 = vmatpush1.msra.mxu0 0.0
  %161 = vmatprep.subr.mxu0 0.0
  %162 = vmatpush1.msra.mxu0 0.0
  %163 = vmatprep.subr.mxu0 0.0
  %164 = vmatpush1.msra.mxu0 0.0
  %165 = vmatprep.subr.mxu0 0.0
  %166 = vmatpush1.msra.mxu0 0.0
  %167 = vmatprep.subr.mxu0 0.0
  %168 = vmatpush1.msra.mxu0 0.0
  %169 = vmatprep.subr.mxu0 0.0
  %170 = vmatpush1.msra.mxu0 0.0
  %171 = vmatprep.subr.mxu0 0.0
  %172 = vmatpush1.msra.mxu0 0.0
  %173 = vmatprep.subr.mxu0 0.0
  %174 = vmatpush1.msra.mxu0 0.0
  %175 = vmatprep.subr.mxu0 0.0
  %176 = vmatpush1.msra.mxu0 0.0
  %177 = vmatprep.subr.mxu0 0.0
  %178 = vmatpush1.msra.mxu0 0.0
  %179 = vmatprep.mubr.f32.mxu0 0.0
  %180 = vmatmul.mubr.f32.gmra.mrb[0].mxu0 %v113
  %v181 = vpop.f32.mrb[0].mxu0
  %v182 = vadd.f32 %v110, %v181
  %v183 = vpop.f32.mrb[0].mxu0
  %184 = vdwg.mxu0
  %v185 = vlaneseq
  %v186 = vand.u32 %v185, 127
  %vm187 = vcmp.lt.s32.totalorder %v186, 0
  %v188 = vsub.s32 0, %v186
  %v189 = vsel %vm187, %v188, %v186
  %v190 = vshrl.u32 %v189, 2
  %v191 = vand.u32 %v189, 3
  %v192 = vsub.s32 0, %v191
  %v193 = vsel %vm187, %v192, %v191
  %vm194 = vcmp.ne.s32.totalorder %v193, 0
  %vm195 = vcmp.lt.s32.totalorder %v193, 0
  %vm196 = vmand %vm195, %vm194
  %v197 = vadd.s32 %v193, 4
  %v198 = vsel %vm196, %v197, %v193
  %vm199 = vcmp.eq.s32.totalorder %v198, 1
  %v200 = vsel %vm199, 0.0, %v11
  %v201 = vld [vmem:[%s1 + $0x18] sm:$0xff]
  %v202 = vld [vmem:[%s1 + $0x20] sm:$0xff]
  %v203 = vld [vmem:[%s1 + $0x28] sm:$0xff]
  %v204 = vld [vmem:[%s1 + $0x30] sm:$0xff]
  %vm205 = vcmask 261120
  %v206 = vsel %vm205, %v11, 0
  %v209 = vsel %vm205, %v200, 0
  %211 = vmatprep.subr.mxu0 0.0
  %212 = vmatpush1.msra.mxu0 %v201
  %213 = vmatprep.subr.mxu0 0.0
  %214 = vmatpush1.msra.mxu0 %v202
  %215 = vmatprep.subr.mxu0 0.0
  %216 = vmatpush1.msra.mxu0 %v203
  %217 = vmatprep.subr.mxu0 0.0
  %218 = vmatpush1.msra.mxu0 %v204
  %219 = vmatprep.subr.mxu0 0.0
  %220 = vmatpush1.msra.mxu0 0.0
  %221 = vmatprep.subr.mxu0 0.0
  %222 = vmatpush1.msra.mxu0 0.0
  %223 = vmatprep.subr.mxu0 0.0
  %224 = vmatpush1.msra.mxu0 0.0
  %225 = vmatprep.subr.mxu0 0.0
  %226 = vmatpush1.msra.mxu0 0.0
  %227 = vmatprep.subr.mxu0 0.0
  %228 = vmatpush1.msra.mxu0 0.0
  %229 = vmatprep.subr.mxu0 0.0
  %230 = vmatpush1.msra.mxu0 0.0
  %231 = vmatprep.subr.mxu0 0.0
  %232 = vmatpush1.msra.mxu0 0.0
  %233 = vmatprep.subr.mxu0 0.0
  %234 = vmatpush1.msra.mxu0 0.0
  %235 = vmatprep.subr.mxu0 0.0
  %236 = vmatpush1.msra.mxu0 0.0
  %237 = vmatprep.subr.mxu0 0.0
  %238 = vmatpush1.msra.mxu0 0.0
  %239 = vmatprep.subr.mxu0 0.0
  %240 = vmatpush1.msra.mxu0 0.0
  %241 = vmatprep.subr.mxu0 0.0
  %242 = vmatpush1.msra.mxu0 0.0
  %243 = vmatprep.subr.mxu0 0.0
  %244 = vmatpush1.msra.mxu0 0.0
  %245 = vmatprep.subr.mxu0 0.0
  %246 = vmatpush1.msra.mxu0 0.0
  %247 = vmatprep.subr.mxu0 0.0
  %248 = vmatpush1.msra.mxu0 0.0
  %249 = vmatprep.subr.mxu0 0.0
  %250 = vmatpush1.msra.mxu0 0.0
  %251 = vmatprep.subr.mxu0 0.0
  %252 = vmatpush1.msra.mxu0 0.0
  %253 = vmatprep.subr.mxu0 0.0
  %254 = vmatpush1.msra.mxu0 0.0
  %255 = vmatprep.subr.mxu0 0.0
  %256 = vmatpush1.msra.mxu0 0.0
  %257 = vmatprep.subr.mxu0 0.0
  %258 = vmatpush1.msra.mxu0 0.0
  %259 = vmatprep.subr.mxu0 0.0
  %260 = vmatpush1.msra.mxu0 0.0
  %261 = vmatprep.subr.mxu0 0.0
  %262 = vmatpush1.msra.mxu0 0.0
  %263 = vmatprep.subr.mxu0 0.0
  %264 = vmatpush1.msra.mxu0 0.0
  %265 = vmatprep.subr.mxu0 0.0
  %266 = vmatpush1.msra.mxu0 0.0
  %267 = vmatprep.subr.mxu0 0.0
  %268 = vmatpush1.msra.mxu0 0.0
  %269 = vmatprep.subr.mxu0 0.0
  %270 = vmatpush1.msra.mxu0 0.0
  %271 = vmatprep.subr.mxu0 0.0
  %272 = vmatpush1.msra.mxu0 0.0
  %273 = vmatprep.subr.mxu0 0.0
  %274 = vmatpush1.msra.mxu0 0.0
  %275 = vmatprep.mubr.f32.mxu0 0.0
  %276 = vmatmul.mubr.f32.gmra.mrb[0].mxu0 %v206
  %v277 = vpop.f32.mrb[0].mxu0
  %v278 = vadd.f32 %v182, %v277
  %v279 = vpop.f32.mrb[0].mxu0
  %280 = vmatprep.mubr.f32.mxu0 0.0
  %281 = vmatmul.mubr.f32.gmra.mrb[0].mxu0 %v209
  %v282 = vpop.f32.mrb[0].mxu0
  %v283 = vadd.f32 %v182, %v282
  %v284 = vpop.f32.mrb[0].mxu0
  %285 = vdwg.mxu0
  %v286 = vmax.f32 %v278, 0.0
  %v287 = vmax.f32 %v283, 0.0
  %v288 = vld [vmem:[%s1 + $0x60] sm:$0xff]
  %v289 = vld [vmem:[%s1 + $0x68] sm:$0xff]
  %v290 = vld [vmem:[%s1 + $0x70] sm:$0xff]
  %v291 = vld [vmem:[%s1 + $0x78] sm:$0xff]
  %v292 = vld [vmem:[%s1 + $0xb0] sm:$0x1]
  %v293 = vlaneseq
  %v294 = vshrl.u32 %v293, 7
  %v295 = vsub.s32 0, %v294
  %v296 = vrot.slane %v292, %v295
  %v298 = vsel %vm205, %v286, 0
  %v301 = vsel %vm205, %v287, 0
  %303 = vmatprep.subr.mxu0 0.0
  %304 = vmatpush1.msra.mxu0 %v288
  %305 = vmatprep.subr.mxu0 0.0
  %306 = vmatpush1.msra.mxu0 %v289
  %307 = vmatprep.subr.mxu0 0.0
  %308 = vmatpush1.msra.mxu0 %v290
  %309 = vmatprep.subr.mxu0 0.0
  %310 = vmatpush1.msra.mxu0 %v291
  %311 = vmatprep.subr.mxu0 0.0
  %312 = vmatpush1.msra.mxu0 0.0
  %313 = vmatprep.subr.mxu0 0.0
  %314 = vmatpush1.msra.mxu0 0.0
  %315 = vmatprep.subr.mxu0 0.0
  %316 = vmatpush1.msra.mxu0 0.0
  %317 = vmatprep.subr.mxu0 0.0
  %318 = vmatpush1.msra.mxu0 0.0
  %319 = vmatprep.subr.mxu0 0.0
  %320 = vmatpush1.msra.mxu0 0.0
  %321 = vmatprep.subr.mxu0 0.0
  %322 = vmatpush1.msra.mxu0 0.0
  %323 = vmatprep.subr.mxu0 0.0
  %324 = vmatpush1.msra.mxu0 0.0
  %325 = vmatprep.subr.mxu0 0.0
  %326 = vmatpush1.msra.mxu0 0.0
  %327 = vmatprep.subr.mxu0 0.0
  %328 = vmatpush1.msra.mxu0 0.0
  %329 = vmatprep.subr.mxu0 0.0
  %330 = vmatpush1.msra.mxu0 0.0
  %331 = vmatprep.subr.mxu0 0.0
  %332 = vmatpush1.msra.mxu0 0.0
  %333 = vmatprep.subr.mxu0 0.0
  %334 = vmatpush1.msra.mxu0 0.0
  %335 = vmatprep.subr.mxu0 0.0
  %336 = vmatpush1.msra.mxu0 0.0
  %337 = vmatprep.subr.mxu0 0.0
  %338 = vmatpush1.msra.mxu0 0.0
  %339 = vmatprep.subr.mxu0 0.0
  %340 = vmatpush1.msra.mxu0 0.0
  %341 = vmatprep.subr.mxu0 0.0
  %342 = vmatpush1.msra.mxu0 0.0
  %343 = vmatprep.subr.mxu0 0.0
  %344 = vmatpush1.msra.mxu0 0.0
  %345 = vmatprep.subr.mxu0 0.0
  %346 = vmatpush1.msra.mxu0 0.0
  %347 = vmatprep.subr.mxu0 0.0
  %348 = vmatpush1.msra.mxu0 0.0
  %349 = vmatprep.subr.mxu0 0.0
  %350 = vmatpush1.msra.mxu0 0.0
  %351 = vmatprep.subr.mxu0 0.0
  %352 = vmatpush1.msra.mxu0 0.0
  %353 = vmatprep.subr.mxu0 0.0
  %354 = vmatpush1.msra.mxu0 0.0
  %355 = vmatprep.subr.mxu0 0.0
  %356 = vmatpush1.msra.mxu0 0.0
  %357 = vmatprep.subr.mxu0 0.0
  %358 = vmatpush1.msra.mxu0 0.0
  %359 = vmatprep.subr.mxu0 0.0
  %360 = vmatpush1.msra.mxu0 0.0
  %361 = vmatprep.subr.mxu0 0.0
  %362 = vmatpush1.msra.mxu0 0.0
  %363 = vmatprep.subr.mxu0 0.0
  %364 = vmatpush1.msra.mxu0 0.0
  %365 = vmatprep.subr.mxu0 0.0
  %366 = vmatpush1.msra.mxu0 0.0
  %367 = vmatprep.mubr.f32.mxu0 0.0
  %368 = vmatmul.mubr.f32.gmra.mrb[0].mxu0 %v298
  %v369 = vpop.f32.mrb[0].mxu0
  %v370 = vadd.f32 %v296, %v369
  %v371 = vpop.f32.mrb[0].mxu0
  %372 = vmatprep.mubr.f32.mxu0 0.0
  %373 = vmatmul.mubr.f32.gmra.mrb[0].mxu0 %v301
  %v374 = vpop.f32.mrb[0].mxu0
  %v375 = vadd.f32 %v296, %v374
  %v376 = vpop.f32.mrb[0].mxu0
  %377 = vdwg.mxu0
  %v378 = vmax.f32 %v370, 0.0
  %v379 = vmax.f32 %v375, 0.0
  %v380 = vld [vmem:[%s1 + $0x80] sm:$0xff]
  %v381 = vld [vmem:[%s1 + $0x88] sm:$0xff]
  %v382 = vld [vmem:[%s1 + $0x90] sm:$0xff]
  %v383 = vld [vmem:[%s1 + $0x98] sm:$0xff]
  %v384 = vld [vmem:[%s1 + $0xb8] sm:$0x1]
  %v385 = vlaneseq
  %v386 = vshrl.u32 %v385, 7
  %v387 = vsub.s32 0, %v386
  %v388 = vrot.slane %v384, %v387
  %v390 = vsel %vm205, %v378, 0
  %v393 = vsel %vm205, %v379, 0
  %395 = vmatprep.subr.mxu0 0.0
  %396 = vmatpush1.msra.mxu0 %v380
  %397 = vmatprep.subr.mxu0 0.0
  %398 = vmatpush1.msra.mxu0 %v381
  %399 = vmatprep.subr.mxu0 0.0
  %400 = vmatpush1.msra.mxu0 %v382
  %401 = vmatprep.subr.mxu0 0.0
  %402 = vmatpush1.msra.mxu0 %v383
  %403 = vmatprep.subr.mxu0 0.0
  %404 = vmatpush1.msra.mxu0 0.0
  %405 = vmatprep.subr.mxu0 0.0
  %406 = vmatpush1.msra.mxu0 0.0
  %407 = vmatprep.subr.mxu0 0.0
  %408 = vmatpush1.msra.mxu0 0.0
  %409 = vmatprep.subr.mxu0 0.0
  %410 = vmatpush1.msra.mxu0 0.0
  %411 = vmatprep.subr.mxu0 0.0
  %412 = vmatpush1.msra.mxu0 0.0
  %413 = vmatprep.subr.mxu0 0.0
  %414 = vmatpush1.msra.mxu0 0.0
  %415 = vmatprep.subr.mxu0 0.0
  %416 = vmatpush1.msra.mxu0 0.0
  %417 = vmatprep.subr.mxu0 0.0
  %418 = vmatpush1.msra.mxu0 0.0
  %419 = vmatprep.subr.mxu0 0.0
  %420 = vmatpush1.msra.mxu0 0.0
  %421 = vmatprep.subr.mxu0 0.0
  %422 = vmatpush1.msra.mxu0 0.0
  %423 = vmatprep.subr.mxu0 0.0
  %424 = vmatpush1.msra.mxu0 0.0
  %425 = vmatprep.subr.mxu0 0.0
  %426 = vmatpush1.msra.mxu0 0.0
  %427 = vmatprep.subr.mxu0 0.0
  %428 = vmatpush1.msra.mxu0 0.0
  %429 = vmatprep.subr.mxu0 0.0
  %430 = vmatpush1.msra.mxu0 0.0
  %431 = vmatprep.subr.mxu0 0.0
  %432 = vmatpush1.msra.mxu0 0.0
  %433 = vmatprep.subr.mxu0 0.0
  %434 = vmatpush1.msra.mxu0 0.0
  %435 = vmatprep.subr.mxu0 0.0
  %436 = vmatpush1.msra.mxu0 0.0
  %437 = vmatprep.subr.mxu0 0.0
  %438 = vmatpush1.msra.mxu0 0.0
  %439 = vmatprep.subr.mxu0 0.0
  %440 = vmatpush1.msra.mxu0 0.0
  %441 = vmatprep.subr.mxu0 0.0
  %442 = vmatpush1.msra.mxu0 0.0
  %443 = vmatprep.subr.mxu0 0.0
  %444 = vmatpush1.msra.mxu0 0.0
  %445 = vmatprep.subr.mxu0 0.0
  %446 = vmatpush1.msra.mxu0 0.0
  %447 = vmatprep.subr.mxu0 0.0
  %448 = vmatpush1.msra.mxu0 0.0
  %449 = vmatprep.subr.mxu0 0.0
  %450 = vmatpush1.msra.mxu0 0.0
  %451 = vmatprep.subr.mxu0 0.0
  %452 = vmatpush1.msra.mxu0 0.0
  %453 = vmatprep.subr.mxu0 0.0
  %454 = vmatpush1.msra.mxu0 0.0
  %455 = vmatprep.subr.mxu0 0.0
  %456 = vmatpush1.msra.mxu0 0.0
  %457 = vmatprep.subr.mxu0 0.0
  %458 = vmatpush1.msra.mxu0 0.0
  %459 = vmatprep.mubr.f32.mxu0 0.0
  %460 = vmatmul.mubr.f32.gmra.mrb[0].mxu0 %v390
  %v461 = vpop.f32.mrb[0].mxu0
  %v462 = vadd.f32 %v388, %v461
  %v463 = vpop.f32.mrb[0].mxu0
  %464 = vmatprep.mubr.f32.mxu0 0.0
  %465 = vmatmul.mubr.f32.gmra.mrb[0].mxu0 %v393
  %v466 = vpop.f32.mrb[0].mxu0
  %v467 = vadd.f32 %v388, %v466
  %v468 = vpop.f32.mrb[0].mxu0
  %469 = vdwg.mxu0
  %vm470 = vcmask 15360
  %471 = vst.msk [vmem:[%s2] sm:$0xff] %vm470, %v462
  %472 = vst.msk [vmem:[%s2 + $0x8] sm:$0xff] %vm470, %v467
  // Predicated region
  $region10: #{tpu_custom_call.1} parent=0 // pred_check
    _
  $region11: #{tpu_custom_call.1} parent=0 // pred_check_branch
    %474 = sbr.rel (0) target = $region13
  $region12: #{tpu_custom_call.1} parent=0 // pred_region
    _
  $region13: #{tpu_custom_call.1} parent=0 // pred_fallthru
    _
  // Predicated region
  $region14: #{tpu_custom_call.1} parent=0 // pred_check
    _
  $region15: #{tpu_custom_call.1} parent=0 // pred_check_branch
    %476 = sbr.rel (0) target = $region17
  $region16: #{tpu_custom_call.1} parent=0 // pred_region
    _
  $region17: #{tpu_custom_call.1} parent=0 // pred_fallthru
    _

</llo_original>
